<compile_context>
chip_gen: v7x
topology: tpu7x:2x2x1
jax: 0.10.0
libtpu: 0.0.40
codegen_flags: <defaults>
</compile_context>

<pallas_src>
import functools

import jax
import jax.numpy as jnp
from jax.experimental import pallas as pl
from jax.experimental.pallas import tpu as pltpu


def _round_up(x, m):
    return ((x + m - 1) // m) * m


def _pick_vmem_limit():
    """Generation-aware scoped-VMEM limit (96 MiB on v5e/v6e, 48 MiB on v7x)."""
    cap = 64 * 1024 * 1024  # conservative fallback: v7x per-core physical VMEM
    try:
        info = pltpu.get_tpu_info()
        c = getattr(info, "vmem_capacity_bytes", None)
        if c:
            cap = int(c)
    except Exception:
        pass
    return min(int(cap * 3 // 4), 100 * 1024 * 1024)


def _mxu_dot(a, b):
    """bf16 MXU matmul with f32 accumulation (used by the pure-JAX reference)."""
    return jnp.dot(a.astype(jnp.bfloat16), b.astype(jnp.bfloat16),
                   preferred_element_type=jnp.float32)


# ----------------------------- MLP kernel -----------------------------------
def _mlp_kernel(x_ref, w1_ref, b1_ref, w2_ref, b2_ref, h0_ref):
    # Linear -> ReLU -> (Dropout: identity in eval) -> Linear.
    # x / w1 / w2 arrive pre-cast to bf16; biases stay f32.
    h = jnp.dot(x_ref[...], w1_ref[...],
                preferred_element_type=jnp.float32) + b1_ref[...]
    h = jnp.maximum(h, 0.0).astype(jnp.bfloat16)
    h0_ref[...] = jnp.dot(h, w2_ref[...],
                          preferred_element_type=jnp.float32) + b2_ref[...]


def mlp_forward(x, w1, b1, w2, b2, *, tile_m, vmem_limit):
    n, in_dim = x.shape
    hid = w1.shape[1]
    out = w2.shape[1]
    return pl.pallas_call(
        _mlp_kernel,
        out_shape=jax.ShapeDtypeStruct((n, out), jnp.float32),
        grid=(n // tile_m,),
        in_specs=[
            pl.BlockSpec((tile_m, in_dim), lambda i: (i, 0)),   # X row tile (bf16)
            pl.BlockSpec((in_dim, hid), lambda i: (0, 0)),      # W1 resident (bf16)
            pl.BlockSpec((1, hid), lambda i: (0, 0)),           # b1 resident (f32)
            pl.BlockSpec((hid, out), lambda i: (0, 0)),         # W2 resident (bf16)
            pl.BlockSpec((1, out), lambda i: (0, 0)),           # b2 resident (f32)
        ],
        out_specs=pl.BlockSpec((tile_m, out), lambda i: (i, 0)),
        compiler_params=pltpu.CompilerParams(
            dimension_semantics=("parallel",),
            vmem_limit_bytes=vmem_limit),
    )(x, w1, b1, w2, b2)


# ------------------------- APPNP propagation kernel --------------------------
def _appnp_kernel(a_ref, h0_ref, out_ref, h_a_ref, h_b_ref, *,
                  alpha, tile_r, a_resident):
    kk = pl.program_id(1)
    r = pl.program_id(2)
    last_k = pl.num_programs(1) - 1

    row0 = pl.multiple_of(r * tile_r, tile_r)
    # In A-resident mode a_ref holds the full (n_pad, n_pad) view; in streamed
    # mode it holds the current (tile_r, n_pad) row tile.
    a_row0 = row0 if a_resident else 0
    a_tile = a_ref[pl.ds(a_row0, tile_r), :]              # (tile_r, n_pad) bf16
    h0_rows = h0_ref[pl.ds(row0, tile_r), :]              # (tile_r, d_pad) f32

    def _step(src_bf16, dst_ref):
        prod = jnp.dot(a_tile, src_bf16,
                       preferred_element_type=jnp.float32)          # f32 acc
        blend = (1.0 - alpha) * prod + alpha * h0_rows               # f32

        @pl.when(kk != last_k)
        def _():
            dst_ref[pl.ds(row0, tile_r), :] = blend.astype(jnp.bfloat16)

        @pl.when(kk == last_k)
        def _():
            out_ref[pl.ds(row0, tile_r), :] = blend                  # f32 out

    # Ping-pong state via k-parity (no commit copy, no seed copy):
    #   kk == 0      : read H0 (cast bf16 at dot input), write buffer A
    #   kk odd       : read A, write B
    #   kk even (>0) : read B, write A
    @pl.when(kk == 0)
    def _():
        _step(h0_ref[...].astype(jnp.bfloat16), h_a_ref)

    @pl.when((kk % 2) == 1)
    def _():
        _step(h_a_ref[...], h_b_ref)

    @pl.when((kk > 0) & ((kk % 2) == 0))
    def _():
        _step(h_b_ref[...], h_a_ref)


def appnp_propagate(a_stack, h0, *, alpha, k, tile_r, a_resident, vmem_limit):
    views, n_pad, _ = a_stack.shape
    d_pad = h0.shape[1]
    num_r = n_pad // tile_r

    if a_resident:
        # Constant index across (kk, r): one view's A is DMA'd once and stays
        # resident in VMEM for the whole k-loop.
        a_spec = pl.BlockSpec((None, n_pad, n_pad), lambda v, kk, r: (v, 0, 0))
    else:
        # Streamed bf16 row tiles: VMEM is O(tile_r * N).
        a_spec = pl.BlockSpec((None, tile_r, n_pad), lambda v, kk, r: (v, r, 0))

    kernel = functools.partial(_appnp_kernel, alpha=alpha, tile_r=tile_r,
                               a_resident=a_resident)
    return pl.pallas_call(
        kernel,
        out_shape=jax.ShapeDtypeStruct((views, n_pad, d_pad), jnp.float32),
        grid=(views, k, num_r),
        in_specs=[
            a_spec,
            # H0 stays resident across the whole grid (f32 for the blend).
            pl.BlockSpec((n_pad, d_pad), lambda v, kk, r: (0, 0)),
        ],
        # Per-view output (constant index across kk, r) -> safe with a
        # "parallel" view axis; mean over views happens in the wrapper.
        out_specs=pl.BlockSpec((None, n_pad, d_pad), lambda v, kk, r: (v, 0, 0)),
        scratch_shapes=[
            pltpu.VMEM((n_pad, d_pad), jnp.bfloat16),   # h state, buffer A
            pltpu.VMEM((n_pad, d_pad), jnp.bfloat16),   # h state, buffer B
        ],
        compiler_params=pltpu.CompilerParams(
            dimension_semantics=("parallel", "arbitrary", "arbitrary"),
            vmem_limit_bytes=vmem_limit),
    )(a_stack, h0)


# ------------------------------ full model -----------------------------------
def rappnp_forward(a_hat_stack, x, params, *, alpha=0.1, k=10,
                   force_streamed=False):
    views, n, _ = a_hat_stack.shape
    in_dim = x.shape[1]
    hid = params["w1"].shape[1]
    out = params["w2"].shape[1]

    # Feature dims padded to 128 lanes (lane-dense MXU + unmasked stores);
    # node dim padded to a multiple of 16 (bf16 sublane pairs) / row tile.
    in_pad = _round_up(in_dim, 128)
    hid_pad = _round_up(hid, 128)
    out_pad = _round_up(out, 128)
    d_pad = out_pad

    vmem_limit = _pick_vmem_limit()

    if n <= 256:
        n_pad = _round_up(n, 16)
        tile_r = n_pad
    else:
        n_pad = _round_up(n, 256)
        tile_r = 256

    # n-aware VMEM budgeting (resident-across-grid pieces of the APPNP call).
    state_bytes = (2 * n_pad * d_pad * 4      # H0 input block (f32, 2 buffers)
                   + 2 * n_pad * d_pad * 2    # ping-pong bf16 state
                   + 2 * n_pad * d_pad * 4)   # per-view f32 output block (2 buffers)
    budget = int(0.85 * vmem_limit)
    a_resident = (not force_streamed) and (
        2 * n_pad * n_pad * 2 + state_bytes <= budget)
    if (not a_resident) and (2 * tile_r * n_pad * 2 + state_bytes > budget):
        # Very large N: shrink streamed A tiles (helps v7x's 64 MiB VMEM).
        if n_pad % 128 == 0:
            tile_r = 128

    # Pad + pre-cast (bf16 built directly; no f32 N^2 staging tensor).
    x_p = jnp.pad(x, ((0, n_pad - n), (0, in_pad - in_dim))).astype(jnp.bfloat16)
    w1_p = jnp.pad(params["w1"],
                   ((0, in_pad - in_dim), (0, hid_pad - hid))).astype(jnp.bfloat16)
    b1_p = jnp.pad(params["b1"], ((0, 0), (0, hid_pad - hid)))
    w2_p = jnp.pad(params["w2"],
                   ((0, hid_pad - hid), (0, out_pad - out))).astype(jnp.bfloat16)
    b2_p = jnp.pad(params["b2"], ((0, 0), (0, out_pad - out)))
    a_p = jnp.pad(a_hat_stack.astype(jnp.bfloat16),
                  ((0, 0), (0, n_pad - n), (0, n_pad - n)))

    h0 = mlp_forward(x_p, w1_p, b1_p, w2_p, b2_p, tile_m=tile_r,
                     vmem_limit=vmem_limit)
    per_view = appnp_propagate(a_p, h0, alpha=alpha, k=k, tile_r=tile_r,
                               a_resident=a_resident, vmem_limit=vmem_limit)
    return jnp.mean(per_view, axis=0)[:n, :out]


def _normalize_adj(adj):
    # DGL APPNPConv: feat * D^-1/2, sum-aggregate, * D^-1/2 (degrees >= 1)
    deg = jnp.maximum(adj.sum(axis=-1), 1.0)
    dinv = 1.0 / jnp.sqrt(deg)
    return adj * dinv[:, None] * dinv[None, :]


# ------------------------------ pure-JAX ref ----------------------------------
def _reference(a_hat_stack, x, params, *, alpha=0.1, k=10):
    # Mirrors the kernel's bf16-MXU / f32-accumulate numerics.
    a_bf = a_hat_stack.astype(jnp.bfloat16)
    h = jnp.maximum(_mxu_dot(x, params["w1"]) + params["b1"], 0.0)
    h0 = _mxu_dot(h, params["w2"]) + params["b2"]
    preds = []
    for v in range(a_bf.shape[0]):
        hcur = h0
        for _ in range(k):
            hcur = (1.0 - alpha) * _mxu_dot(a_bf[v], hcur) + alpha * h0
        preds.append(hcur)
    return jnp.stack(preds).mean(axis=0)


def _make_case(key, num_views, n_nodes, in_dim, hid_dim, out_dim):
    k_x, k_a, k_w1, k_b1, k_w2, k_b2 = jax.random.split(key, 6)
    x = jax.random.normal(k_x, (n_nodes, in_dim), dtype=jnp.float32)
    w1 = jax.random.normal(k_w1, (in_dim, hid_dim), jnp.float32) / jnp.sqrt(in_dim)
    b1 = jax.random.normal(k_b1, (1, hid_dim), jnp.float32) * 0.01
    w2 = jax.random.normal(k_w2, (hid_dim, out_dim), jnp.float32) / jnp.sqrt(hid_dim)
    b2 = jax.random.normal(k_b2, (1, out_dim), jnp.float32) * 0.01
    params = {"w1": w1, "b1": b1, "w2": w2, "b2": b2}
    a_keys = jax.random.split(k_a, num_views)
    adjs = []
    for ak in a_keys:
        raw = (jax.random.uniform(ak, (n_nodes, n_nodes)) < 0.3).astype(jnp.float32)
        sym = jnp.clip(raw + raw.T + jnp.eye(n_nodes, dtype=jnp.float32), 0.0, 1.0)
        adjs.append(_normalize_adj(sym))
    return jnp.stack(adjs), x, params


if __name__ == "__main__":
    key = jax.random.PRNGKey(0)
    alpha, k = 0.1, 10
    k_small, k_med = jax.random.split(key, 2)

    cases = [
        # (A, X, params, force_streamed): small single-tile, A-resident
        (*_make_case(k_small, 2, 16, 32, 32, 16), False),
        # multi-row-tile path (n_pad=512, tile_r=256), A-resident + ping-pong
        (*_make_case(k_med, 2, 300, 32, 64, 16), False),
        # same shapes, forced streamed-A path (re-fetch per (k, row_tile))
        (*_make_case(k_med, 2, 300, 32, 64, 16), True),
    ]

    for a_hat_stack, x, params, force_streamed in cases:
        n_nodes, out_dim = x.shape[0], params["w2"].shape[1]
        out = rappnp_forward(a_hat_stack, x, params, alpha=alpha, k=k,
                             force_streamed=force_streamed)
        out = jax.block_until_ready(out)
        ref = _reference(a_hat_stack, x, params, alpha=alpha, k=k)
        assert out.shape == (n_nodes, out_dim)
        err = float(jnp.max(jnp.abs(out - ref)))
        assert jnp.allclose(out, ref, atol=5e-3, rtol=5e-3), err

    print("KERNEL_OK")
</pallas_src>

<mosaic_0001>
module attributes {stable_mosaic.version = 11 : i64} {
  func.func @_mlp_kernel(%arg0: i32, %arg1: memref<16x128xbf16, #tpu.memory_space<vmem>>, %arg2: memref<128x128xbf16, #tpu.memory_space<vmem>>, %arg3: memref<1x128xf32, #tpu.memory_space<vmem>>, %arg4: memref<128x128xbf16, #tpu.memory_space<vmem>>, %arg5: memref<1x128xf32, #tpu.memory_space<vmem>>, %arg6: memref<16x128xf32, #tpu.memory_space<vmem>>) attributes {dimension_semantics = [#tpu.dimension_semantics<parallel>], iteration_bounds = array<i64: 1>, scalar_prefetch = 0 : i64, scratch_operands = 0 : i64, tpu.core_type = #tpu.core_type<tc>, window_params = [{transform_indices = @transform_0, window_bounds = array<i64: 16, 128>}, {pipeline_mode = #tpu.pipeline_mode<synchronous>, transform_indices = @transform_1, window_bounds = array<i64: 128, 128>}, {pipeline_mode = #tpu.pipeline_mode<synchronous>, transform_indices = @transform_2, window_bounds = array<i64: 1, 128>}, {pipeline_mode = #tpu.pipeline_mode<synchronous>, transform_indices = @transform_3, window_bounds = array<i64: 128, 128>}, {pipeline_mode = #tpu.pipeline_mode<synchronous>, transform_indices = @transform_4, window_bounds = array<i64: 1, 128>}, {transform_indices = @transform_5, window_bounds = array<i64: 16, 128>}]} {
    %c0 = arith.constant 0 : index
    %c0_0 = arith.constant 0 : index
    %0 = vector.load %arg1[%c0, %c0_0] : memref<16x128xbf16, #tpu.memory_space<vmem>>, vector<16x128xbf16>
    %c0_1 = arith.constant 0 : index
    %c0_2 = arith.constant 0 : index
    %1 = vector.load %arg2[%c0_1, %c0_2] : memref<128x128xbf16, #tpu.memory_space<vmem>>, vector<128x128xbf16>
    %cst = arith.constant dense<0.000000e+00> : vector<16x128xf32>
    %2 = tpu.matmul %0, %1, %cst {dimension_numbers = #tpu.dot_dimension_numbers<[1], [0], [0], [1], [0, 0, 1, 1], [], []>} : vector<16x128xbf16>, vector<128x128xbf16>, vector<16x128xf32> -> vector<16x128xf32>
    %c0_3 = arith.constant 0 : index
    %c0_4 = arith.constant 0 : index
    %3 = vector.load %arg3[%c0_3, %c0_4] : memref<1x128xf32, #tpu.memory_space<vmem>>, vector<1x128xf32>
    %4 = vector.broadcast %3 : vector<1x128xf32> to vector<16x128xf32>
    %5 = arith.addf %2, %4 : vector<16x128xf32>
    %cst_5 = arith.constant 0.000000e+00 : f32
    %6 = vector.broadcast %cst_5 : f32 to vector<16x128xf32>
    %7 = arith.maximumf %5, %6 : vector<16x128xf32>
    %8 = arith.truncf %7 : vector<16x128xf32> to vector<16x128xbf16>
    %c0_6 = arith.constant 0 : index
    %c0_7 = arith.constant 0 : index
    %9 = vector.load %arg4[%c0_6, %c0_7] : memref<128x128xbf16, #tpu.memory_space<vmem>>, vector<128x128xbf16>
    %cst_8 = arith.constant dense<0.000000e+00> : vector<16x128xf32>
    %10 = tpu.matmul %8, %9, %cst_8 {dimension_numbers = #tpu.dot_dimension_numbers<[1], [0], [0], [1], [0, 0, 1, 1], [], []>} : vector<16x128xbf16>, vector<128x128xbf16>, vector<16x128xf32> -> vector<16x128xf32>
    %c0_9 = arith.constant 0 : index
    %c0_10 = arith.constant 0 : index
    %11 = vector.load %arg5[%c0_9, %c0_10] : memref<1x128xf32, #tpu.memory_space<vmem>>, vector<1x128xf32>
    %12 = vector.broadcast %11 : vector<1x128xf32> to vector<16x128xf32>
    %13 = arith.addf %10, %12 : vector<16x128xf32>
    %c0_11 = arith.constant 0 : index
    %c0_12 = arith.constant 0 : index
    %14 = vector.load %arg6[%c0_11, %c0_12] : memref<16x128xf32, #tpu.memory_space<vmem>>, vector<16x128xf32>
    tpu.vector_store %arg6[%c0_11, %c0_12], %13 {strides = array<i32>} : memref<16x128xf32, #tpu.memory_space<vmem>>, vector<16x128xf32>,
    return
  }
  func.func @transform_0(%arg0: i32) -> (i32, i32) {
    %c0_i32 = arith.constant 0 : i32
    %c0_i32_0 = arith.constant 0 : i32
    return %arg0, %c0_i32 : i32, i32
  }
  func.func @transform_1(%arg0: i32) -> (i32, i32) {
    %c0_i32 = arith.constant 0 : i32
    %c0_i32_0 = arith.constant 0 : i32
    %c0_i32_1 = arith.constant 0 : i32
    return %c0_i32, %c0_i32_0 : i32, i32
  }
  func.func @transform_2(%arg0: i32) -> (i32, i32) {
    %c0_i32 = arith.constant 0 : i32
    %c0_i32_0 = arith.constant 0 : i32
    %c0_i32_1 = arith.constant 0 : i32
    return %c0_i32, %c0_i32_0 : i32, i32
  }
  func.func @transform_3(%arg0: i32) -> (i32, i32) {
    %c0_i32 = arith.constant 0 : i32
    %c0_i32_0 = arith.constant 0 : i32
    %c0_i32_1 = arith.constant 0 : i32
    return %c0_i32, %c0_i32_0 : i32, i32
  }
  func.func @transform_4(%arg0: i32) -> (i32, i32) {
    %c0_i32 = arith.constant 0 : i32
    %c0_i32_0 = arith.constant 0 : i32
    %c0_i32_1 = arith.constant 0 : i32
    return %c0_i32, %c0_i32_0 : i32, i32
  }
  func.func @transform_5(%arg0: i32) -> (i32, i32) {
    %c0_i32 = arith.constant 0 : i32
    %c0_i32_0 = arith.constant 0 : i32
    return %arg0, %c0_i32 : i32, i32
  }
}

</mosaic_0001>

<llo_original>
// kernel: tpu_custom_call.1
$region0: #{tpu_custom_call.1}
  #allocation0 [shape = 'u32[]', space=smem, size = 0x4, offset = 0x4, fixed_abs, tag = 'smem constant byte address 0x4 - core index']
  #allocation1 [shape = 'u32[144,128]{1,0:T(1,128)}', space=vmem, size = 0x12000, scoped, tag = 'internal scratch']
  %s0 = inlined_call_operand.hbm [shape: bf16[16,128], index: 0, kind: input, shape index: {}]
  %s1 = inlined_call_operand.hbm [shape: bf16[128,128], index: 1, kind: input, shape index: {}]
  %s2 = inlined_call_operand.vmem [shape: f32[1,128], index: 2, kind: input, shape index: {}]
  %s3 = inlined_call_operand.hbm [shape: bf16[128,128], index: 3, kind: input, shape index: {}]
  %s4 = inlined_call_operand.vmem [shape: f32[1,128], index: 4, kind: input, shape index: {}]
  %s5 = inlined_call_operand.hbm [shape: f32[16,128], index: 5, kind: output, shape index: {}]
  %s6 = sld [smem:[#allocation0]]
  $region42: #{tpu_custom_call.1} parent=0
    _
  %s8 = ssub.s32 1, %s6
  %s9 = scalar_select 0, %s8, %s6
  $region1: #{tpu_custom_call.1} parent=0
    #allocation2 [shape = 'u8[4096]{0}', space=vmem, size = 0x1000, scoped, tag = 'input window, operand 0, single buffered']
    #allocation3 [shape = 's32[1]{0}', space=sflag, size = 0x4, scoped, tag = 'scoped memory for tpu_custom_call.1']
    #allocation4 [shape = 's32[1]{0}', space=sflag, size = 0x4, scoped, tag = 'scoped memory for tpu_custom_call.1']
    #allocation5 [shape = 'u8[32768]{0}', space=vmem, size = 0x8000, scoped, tag = 'input window, operand 1, single buffered']
    #allocation6 [shape = 's32[1]{0}', space=sflag, size = 0x4, scoped, tag = 'scoped memory for tpu_custom_call.1']
    #allocation7 [shape = 'u8[32768]{0}', space=vmem, size = 0x8000, scoped, tag = 'input window, operand 3, single buffered']
    #allocation8 [shape = 'u8[8192]{0}', space=vmem, size = 0x2000, scoped, tag = 'output window, operand 0, single buffered']
    %10 = vsyncpa [#allocation3], 0
    %11 = vsyncpa [#allocation6], 0
    %12 = vsyncpa [#allocation4], 0
    // Predicated region
    $region2: #{tpu_custom_call.1} parent=1 // pred_check
      _
    $region3: #{tpu_custom_call.1} parent=1 // pred_check_branch
      %14 = sbr.rel (0) target = $region5
    $region4: #{tpu_custom_call.1} parent=1 // pred_region
      %s16 = ssub.s32 128, 128
      %17 = vsyncadd [#allocation3], %s16
      %s18 = sshll.u32 [#allocation2], 4
      %s19 = int_to_ptr.vmem [resolvable:$true] %s18
      %24 = dma.hbm_to_vmem [thread:$0]  %s0, 128, %s19, [#allocation3], 64, 64, 4
    $region5: #{tpu_custom_call.1} parent=1 // pred_fallthru
      _
    // Predicated region
    $region6: #{tpu_custom_call.1} parent=1 // pred_check
      _
    $region7: #{tpu_custom_call.1} parent=1 // pred_check_branch
      %26 = sbr.rel (0) target = $region9
    $region8: #{tpu_custom_call.1} parent=1 // pred_region
      %s28 = ssub.s32 1024, 1024
      %29 = vsyncadd [#allocation6], %s28
      %s30 = sshll.u32 [#allocation5], 4
      %s31 = int_to_ptr.vmem [resolvable:$true] %s30
      %36 = dma.hbm_to_vmem [thread:$0]  %s1, 1024, %s31, [#allocation6], 64, 64, 4
    $region9: #{tpu_custom_call.1} parent=1 // pred_fallthru
      _
    // Predicated region
    $region10: #{tpu_custom_call.1} parent=1 // pred_check
      _
    $region11: #{tpu_custom_call.1} parent=1 // pred_check_branch
      %38 = sbr.rel (0) target = $region13
    $region12: #{tpu_custom_call.1} parent=1 // pred_region
      _
    $region13: #{tpu_custom_call.1} parent=1 // pred_fallthru
      _
    // Predicated region
    $region14: #{tpu_custom_call.1} parent=1 // pred_check
      _
    $region15: #{tpu_custom_call.1} parent=1 // pred_check_branch
      %40 = sbr.rel (0) target = $region17
    $region16: #{tpu_custom_call.1} parent=1 // pred_region
      %s42 = ssub.s32 1024, 1024
      %43 = vsyncadd [#allocation6], %s42
      %s44 = sshll.u32 [#allocation7], 4
      %s45 = int_to_ptr.vmem [resolvable:$true] %s44
      %50 = dma.hbm_to_vmem [thread:$0]  %s3, 1024, %s45, [#allocation6], 64, 64, 4
    $region17: #{tpu_custom_call.1} parent=1 // pred_fallthru
      _
    // Predicated region
    $region18: #{tpu_custom_call.1} parent=1 // pred_check
      _
    $region19: #{tpu_custom_call.1} parent=1 // pred_check_branch
      %52 = sbr.rel (0) target = $region21
    $region20: #{tpu_custom_call.1} parent=1 // pred_region
      _
    $region21: #{tpu_custom_call.1} parent=1 // pred_fallthru
      _
    // Predicated region
    $region22: #{tpu_custom_call.1} parent=1 // pred_check
      _
    $region23: #{tpu_custom_call.1} parent=1 // pred_check_branch
      %54 = sbr.rel (0) target = $region25
    $region24: #{tpu_custom_call.1} parent=1 // pred_region
      %55 = dma.done [#allocation3], 128
    $region25: #{tpu_custom_call.1} parent=1 // pred_fallthru
      _
    // Predicated region
    $region26: #{tpu_custom_call.1} parent=1 // pred_check
      _
    $region27: #{tpu_custom_call.1} parent=1 // pred_check_branch
      %57 = sbr.rel (0) target = $region29
    $region28: #{tpu_custom_call.1} parent=1 // pred_region
      %58 = dma.done [#allocation6], 1024
    $region29: #{tpu_custom_call.1} parent=1 // pred_fallthru
      _
    // Predicated region
    $region30: #{tpu_custom_call.1} parent=1 // pred_check
      _
    $region31: #{tpu_custom_call.1} parent=1 // pred_check_branch
      %60 = sbr.rel (0) target = $region33
    $region32: #{tpu_custom_call.1} parent=1 // pred_region
      %61 = dma.done [#allocation6], 1024
    $region33: #{tpu_custom_call.1} parent=1 // pred_fallthru
      _
    %v63 = vld [vmem:[#allocation2] sm:$0xf]
    %v64 = vld [vmem:[#allocation2 + $0x4] sm:$0xf]
    %v65 = vld [vmem:[#allocation5] sm:$0xf]
    %v66 = vld [vmem:[#allocation5 + $0x4] sm:$0xf]
    %v67 = vld [vmem:[#allocation5 + $0x8] sm:$0xf]
    %v68 = vld [vmem:[#allocation5 + $0xc] sm:$0xf]
    %v69 = vld [vmem:[#allocation5 + $0x10] sm:$0xf]
    %v70 = vld [vmem:[#allocation5 + $0x14] sm:$0xf]
    %v71 = vld [vmem:[#allocation5 + $0x18] sm:$0xf]
    %v72 = vld [vmem:[#allocation5 + $0x1c] sm:$0xf]
    %v73 = vld [vmem:[#allocation5 + $0x20] sm:$0xf]
    %v74 = vld [vmem:[#allocation5 + $0x24] sm:$0xf]
    %v75 = vld [vmem:[#allocation5 + $0x28] sm:$0xf]
    %v76 = vld [vmem:[#allocation5 + $0x2c] sm:$0xf]
    %v77 = vld [vmem:[#allocation5 + $0x30] sm:$0xf]
    %v78 = vld [vmem:[#allocation5 + $0x34] sm:$0xf]
    %v79 = vld [vmem:[#allocation5 + $0x38] sm:$0xf]
    %v80 = vld [vmem:[#allocation5 + $0x3c] sm:$0xf]
    %v81 = vld [vmem:[%s2] sm:$0x1]
    %v83 = vlaneseq
    %v84 = vshrl.u32 %v83, 7
    %v85 = vsub.s32 0, %v84
    %v86 = vrot.slane %v81, %v85
    %v90 = vunpack.c.l.b16 %v63
    %v91 = vunpack.c.l.b16 %v64
    %v92 = vpack.c.b16 %v91, %v90
    %v110 = vunpack.c.l.b16 %v65
    %v111 = vunpack.c.l.b16 %v66
    %v112 = vunpack.c.l.b16 %v67
    %v113 = vunpack.c.l.b16 %v68
    %v114 = vunpack.c.l.b16 %v69
    %v115 = vunpack.c.l.b16 %v70
    %v116 = vunpack.c.l.b16 %v71
    %v117 = vunpack.c.l.b16 %v72
    %v118 = vunpack.c.l.b16 %v73
    %v119 = vunpack.c.l.b16 %v74
    %v120 = vunpack.c.l.b16 %v75
    %v121 = vunpack.c.l.b16 %v76
    %v122 = vunpack.c.l.b16 %v77
    %v123 = vunpack.c.l.b16 %v78
    %v124 = vunpack.c.l.b16 %v79
    %v125 = vunpack.c.l.b16 %v80
    %v126 = vpack.c.b16 %v111, %v110
    %v127 = vpack.c.b16 %v113, %v112
    %v128 = vpack.c.b16 %v115, %v114
    %v129 = vpack.c.b16 %v117, %v116
    %v130 = vpack.c.b16 %v119, %v118
    %v131 = vpack.c.b16 %v121, %v120
    %v132 = vpack.c.b16 %v123, %v122
    %v133 = vpack.c.b16 %v125, %v124
    %142 = vmatprep.subr.bf16.mxu0 0
    %143 = vmatpush1.bf16.msra.mxu0 %v126
    %144 = vmatprep.subr.bf16.mxu0 0
    %145 = vmatpush1.bf16.msra.mxu0 %v127
    %146 = vmatprep.subr.bf16.mxu0 0
    %147 = vmatpush1.bf16.msra.mxu0 %v128
    %148 = vmatprep.subr.bf16.mxu0 0
    %149 = vmatpush1.bf16.msra.mxu0 %v129
    %150 = vmatprep.subr.bf16.mxu0 0
    %151 = vmatpush1.bf16.msra.mxu0 %v130
    %152 = vmatprep.subr.bf16.mxu0 0
    %153 = vmatpush1.bf16.msra.mxu0 %v131
    %154 = vmatprep.subr.bf16.mxu0 0
    %155 = vmatpush1.bf16.msra.mxu0 %v132
    %156 = vmatprep.subr.bf16.mxu0 0
    %157 = vmatpush1.bf16.msra.mxu0 %v133
    %158 = vmatprep.subr.bf16.mxu0 0
    %159 = vmatpush1.bf16.msra.mxu0 0
    %160 = vmatprep.subr.bf16.mxu0 0
    %161 = vmatpush1.bf16.msra.mxu0 0
    %162 = vmatprep.subr.bf16.mxu0 0
    %163 = vmatpush1.bf16.msra.mxu0 0
    %164 = vmatprep.subr.bf16.mxu0 0
    %165 = vmatpush1.bf16.msra.mxu0 0
    %166 = vmatprep.subr.bf16.mxu0 0
    %167 = vmatpush1.bf16.msra.mxu0 0
    %168 = vmatprep.subr.bf16.mxu0 0
    %169 = vmatpush1.bf16.msra.mxu0 0
    %170 = vmatprep.subr.bf16.mxu0 0
    %171 = vmatpush1.bf16.msra.mxu0 0
    %172 = vmatprep.subr.bf16.mxu0 0
    %173 = vmatpush1.bf16.msra.mxu0 0
    %174 = vmatprep.mubr.bf16.mxu0 0
    %175 = vmatmul.mubr.bf16.gmra.mrb[0].mxu0 %v92
    %v176 = vpop.f32.mrb[0].mxu0
    %v177 = vadd.f32 %v86, %v176
    %v178 = vpop.f32.mrb[0].mxu0
    %v179 = vpop.f32.mrb[0].mxu0
    %v180 = vadd.f32 %v86, %v179
    %v181 = vpop.f32.mrb[0].mxu0
    %182 = vdwg.mxu0
    %v183 = vmax.f32 %v177, 0.0
    %v184 = vmax.f32 %v180, 0.0
    %v185 = vpack.c.bf16 %v184, %v183
    %v186 = vld [vmem:[#allocation7] sm:$0xf]
    %v187 = vld [vmem:[#allocation7 + $0x4] sm:$0xf]
    %v188 = vld [vmem:[#allocation7 + $0x8] sm:$0xf]
    %v189 = vld [vmem:[#allocation7 + $0xc] sm:$0xf]
    %v190 = vld [vmem:[#allocation7 + $0x10] sm:$0xf]
    %v191 = vld [vmem:[#allocation7 + $0x14] sm:$0xf]
    %v192 = vld [vmem:[#allocation7 + $0x18] sm:$0xf]
    %v193 = vld [vmem:[#allocation7 + $0x1c] sm:$0xf]
    %v194 = vld [vmem:[#allocation7 + $0x20] sm:$0xf]
    %v195 = vld [vmem:[#allocation7 + $0x24] sm:$0xf]
    %v196 = vld [vmem:[#allocation7 + $0x28] sm:$0xf]
    %v197 = vld [vmem:[#allocation7 + $0x2c] sm:$0xf]
    %v198 = vld [vmem:[#allocation7 + $0x30] sm:$0xf]
    %v199 = vld [vmem:[#allocation7 + $0x34] sm:$0xf]
    %v200 = vld [vmem:[#allocation7 + $0x38] sm:$0xf]
    %v201 = vld [vmem:[#allocation7 + $0x3c] sm:$0xf]
    %v202 = vld [vmem:[%s4] sm:$0x1]
    %v204 = vlaneseq
    %v205 = vshrl.u32 %v204, 7
    %v206 = vsub.s32 0, %v205
    %v207 = vrot.slane %v202, %v206
    %v225 = vunpack.c.l.b16 %v186
    %v226 = vunpack.c.l.b16 %v187
    %v227 = vunpack.c.l.b16 %v188
    %v228 = vunpack.c.l.b16 %v189
    %v229 = vunpack.c.l.b16 %v190
    %v230 = vunpack.c.l.b16 %v191
    %v231 = vunpack.c.l.b16 %v192
    %v232 = vunpack.c.l.b16 %v193
    %v233 = vunpack.c.l.b16 %v194
    %v234 = vunpack.c.l.b16 %v195
    %v235 = vunpack.c.l.b16 %v196
    %v236 = vunpack.c.l.b16 %v197
    %v237 = vunpack.c.l.b16 %v198
    %v238 = vunpack.c.l.b16 %v199
    %v239 = vunpack.c.l.b16 %v200
    %v240 = vunpack.c.l.b16 %v201
    %v241 = vpack.c.b16 %v226, %v225
    %v242 = vpack.c.b16 %v228, %v227
    %v243 = vpack.c.b16 %v230, %v229
    %v244 = vpack.c.b16 %v232, %v231
    %v245 = vpack.c.b16 %v234, %v233
    %v246 = vpack.c.b16 %v236, %v235
    %v247 = vpack.c.b16 %v238, %v237
    %v248 = vpack.c.b16 %v240, %v239
    %257 = vmatprep.subr.bf16.mxu0 0
    %258 = vmatpush1.bf16.msra.mxu0 %v241
    %259 = vmatprep.subr.bf16.mxu0 0
    %260 = vmatpush1.bf16.msra.mxu0 %v242
    %261 = vmatprep.subr.bf16.mxu0 0
    %262 = vmatpush1.bf16.msra.mxu0 %v243
    %263 = vmatprep.subr.bf16.mxu0 0
    %264 = vmatpush1.bf16.msra.mxu0 %v244
    %265 = vmatprep.subr.bf16.mxu0 0
    %266 = vmatpush1.bf16.msra.mxu0 %v245
    %267 = vmatprep.subr.bf16.mxu0 0
    %268 = vmatpush1.bf16.msra.mxu0 %v246
    %269 = vmatprep.subr.bf16.mxu0 0
    %270 = vmatpush1.bf16.msra.mxu0 %v247
    %271 = vmatprep.subr.bf16.mxu0 0
    %272 = vmatpush1.bf16.msra.mxu0 %v248
    %273 = vmatprep.subr.bf16.mxu0 0
    %274 = vmatpush1.bf16.msra.mxu0 0
    %275 = vmatprep.subr.bf16.mxu0 0
    %276 = vmatpush1.bf16.msra.mxu0 0
    %277 = vmatprep.subr.bf16.mxu0 0
    %278 = vmatpush1.bf16.msra.mxu0 0
    %279 = vmatprep.subr.bf16.mxu0 0
    %280 = vmatpush1.bf16.msra.mxu0 0
    %281 = vmatprep.subr.bf16.mxu0 0
    %282 = vmatpush1.bf16.msra.mxu0 0
    %283 = vmatprep.subr.bf16.mxu0 0
    %284 = vmatpush1.bf16.msra.mxu0 0
    %285 = vmatprep.subr.bf16.mxu0 0
    %286 = vmatpush1.bf16.msra.mxu0 0
    %287 = vmatprep.subr.bf16.mxu0 0
    %288 = vmatpush1.bf16.msra.mxu0 0
    %289 = vmatprep.mubr.bf16.mxu0 0
    %290 = vmatmul.mubr.bf16.gmra.mrb[0].mxu0 %v185
    %v291 = vpop.f32.mrb[0].mxu0
    %v292 = vadd.f32 %v207, %v291
    %v293 = vpop.f32.mrb[0].mxu0
    %v294 = vpop.f32.mrb[0].mxu0
    %v295 = vadd.f32 %v207, %v294
    %v296 = vpop.f32.mrb[0].mxu0
    %297 = vdwg.mxu0
    %298 = vst [vmem:[#allocation8] sm:$0xff] %v292
    %299 = vst [vmem:[#allocation8 + $0x8] sm:$0xff] %v295
    // Predicated region
    $region34: #{tpu_custom_call.1} parent=1 // pred_check
      _
    $region35: #{tpu_custom_call.1} parent=1 // pred_check_branch
      %301 = sbr.rel (0) target = $region37
    $region36: #{tpu_custom_call.1} parent=1 // pred_region
      %s303 = ssub.s32 256, 256
      %304 = vsyncadd [#allocation4], %s303
      %s305 = sshll.u32 [#allocation8], 4
      %s306 = int_to_ptr.vmem [resolvable:$true] %s305
      %311 = dma.vmem_to_hbm [thread:$0]  %s306, 256, %s5, [#allocation4], 128, 128, 8
    $region37: #{tpu_custom_call.1} parent=1 // pred_fallthru
      _
    // Predicated region
    $region38: #{tpu_custom_call.1} parent=1 // pred_check
      _
    $region39: #{tpu_custom_call.1} parent=1 // pred_check_branch
      %313 = sbr.rel (0) target = $region41
    $region40: #{tpu_custom_call.1} parent=1 // pred_region
      %314 = dma.done [#allocation4], 256
    $region41: #{tpu_custom_call.1} parent=1 // pred_fallthru
      _
    %315 = vsyncpa [#allocation3], 1
    %316 = vsyncpa [#allocation6], 1
    %317 = vsyncpa [#allocation4], 1

</llo_original>
